<compile_context>
chip_gen: v5e
topology: v5e:2x2
jax: 0.10.0
libtpu: 0.0.40
codegen_flags: <defaults>
</compile_context>

<pallas_src>
import jax
import jax.numpy as jnp
from jax.experimental import pallas as pl
from jax.experimental.pallas import tpu as pltpu


def _chunk_bounds(dim0, nbytes, *, max_chunks=4, min_chunk_bytes=4 << 20):
    """Split axis 0 into a few large contiguous chunks (static Python ints).

    Small arrays (< 8 MiB) get a single whole-array DMA; large arrays get up to
    `max_chunks` concurrent DMAs so multiple DMA engines can be in flight.
    """
    if dim0 <= 1 or nbytes < 2 * min_chunk_bytes:
        return ((0, dim0),)
    n = int(min(max_chunks, dim0, max(1, nbytes // min_chunk_bytes)))
    base, rem = divmod(dim0, n)
    bounds, start = [], 0
    for i in range(n):
        sz = base + (1 if i < rem else 0)
        bounds.append((start, sz))
        start += sz
    return tuple(bounds)


def _make_hbm_dma_copy_kernel(chunk_bounds):
    """Build a kernel that DMAs `x` -> `o` directly in HBM, in large chunks."""
    n_chunks = len(chunk_bounds)

    def kernel(x_hbm, o_hbm, sems):
        # Start all chunk DMAs (they overlap), then wait for all of them.
        copies = []
        for idx, (start, size) in enumerate(chunk_bounds):
            cp = pltpu.make_async_copy(
                x_hbm.at[pl.ds(start, size)],
                o_hbm.at[pl.ds(start, size)],
                sems.at[idx],
            )
            cp.start()
            copies.append(cp)
        for cp in copies:
            cp.wait()

    return kernel, n_chunks


def resnext_forward(x, *, run_kernel=False):
    """Pallas implementation of ResNeXt.forward(x) == x.

    Default (run_kernel=False) is the optimal identity fast path: return x and
    skip all HBM traffic.  With run_kernel=True a materialized copy is produced
    via a direct HBM->HBM DMA Pallas kernel (no VMEM round trip).
    """
    if not run_kernel:
        return x
    if x.ndim == 0 or x.size == 0:
        # Nothing worth a DMA descriptor; identity is exact.
        return x

    nbytes = x.size * jnp.dtype(x.dtype).itemsize
    bounds = _chunk_bounds(x.shape[0], nbytes)
    kernel, n_chunks = _make_hbm_dma_copy_kernel(bounds)

    return pl.pallas_call(
        kernel,
        out_shape=jax.ShapeDtypeStruct(x.shape, x.dtype),
        # Raw HBM refs on both sides: the kernel moves bytes HBM->HBM directly,
        # no BlockSpec tiling, no (8,128) constraint, no VMEM pressure.
        in_specs=[pl.BlockSpec(memory_space=pl.ANY)],
        out_specs=pl.BlockSpec(memory_space=pl.ANY),
        scratch_shapes=[pltpu.SemaphoreType.DMA((n_chunks,))],
        cost_estimate=pl.CostEstimate(
            flops=0,
            transcendentals=0,
            bytes_accessed=2 * nbytes,  # pure memory traffic: read N + write N
        ),
    )(x)


if __name__ == "__main__":
    # Deterministic example input, NCHW: batch=2, channels=4, H=W=16.
    key = jax.random.PRNGKey(0)
    x = jax.random.normal(key, (2, 4, 16, 16), dtype=jnp.float32)

    # (ResNeXt.__init__ takes in_channels/out_channels/width but creates no
    #  parameters in the reference; nothing to initialize.)

    # Exercise the Pallas HBM->HBM DMA copy kernel once.
    y = resnext_forward(x, run_kernel=True)
    jax.block_until_ready(y)
    assert y.shape == x.shape and y.dtype == x.dtype
    assert bool(jnp.array_equal(y, x))

    # Default path: optimal identity (no kernel, no HBM traffic).
    y_fast = resnext_forward(x)
    assert bool(jnp.array_equal(y_fast, x))

    print("KERNEL_OK")
</pallas_src>

<mosaic_0001>
module attributes {stable_mosaic.version = 11 : i64} {
  func.func @kernel(%arg0: memref<2x4x16x16xf32, #tpu.memory_space<any>>, %arg1: memref<2x4x16x16xf32, #tpu.memory_space<any>>, %arg2: memref<1x!tpu.dma_semaphore, #tpu.memory_space<semaphore_mem>>) attributes {dimension_semantics = [], scalar_prefetch = 0 : i64, scratch_operands = 1 : i64, tpu.core_type = #tpu.core_type<tc>} {
    %c0_i32 = arith.constant 0 : i32
    %c0_i32_0 = arith.constant 0 : i32
    %c0_i32_1 = arith.constant 0 : i32
    %c0_i32_2 = arith.constant 0 : i32
    %c0_i32_3 = arith.constant 0 : i32
    %0 = tpu.memref_slice %arg0[%c0_i32_0, %c0_i32_1, %c0_i32_2, %c0_i32_3] : memref<2x4x16x16xf32, #tpu.memory_space<any>> -> memref<2x4x16x16xf32, #tpu.memory_space<any>>
    %c0_i32_4 = arith.constant 0 : i32
    %c0_i32_5 = arith.constant 0 : i32
    %c0_i32_6 = arith.constant 0 : i32
    %c0_i32_7 = arith.constant 0 : i32
    %1 = tpu.memref_slice %arg1[%c0_i32_4, %c0_i32_5, %c0_i32_6, %c0_i32_7] : memref<2x4x16x16xf32, #tpu.memory_space<any>> -> memref<2x4x16x16xf32, #tpu.memory_space<any>>
    %2 = tpu.memref_slice %arg2[%c0_i32] : memref<1x!tpu.dma_semaphore, #tpu.memory_space<semaphore_mem>> -> memref<1x!tpu.dma_semaphore, #tpu.memory_space<semaphore_mem>>
    %3 = tpu.memref_squeeze %2 : memref<1x!tpu.dma_semaphore, #tpu.memory_space<semaphore_mem>> -> memref<!tpu.dma_semaphore, #tpu.memory_space<semaphore_mem>>
    tpu.enqueue_dma source(%0 : memref<2x4x16x16xf32, #tpu.memory_space<any>>) target(%1 : memref<2x4x16x16xf32, #tpu.memory_space<any>>) target_semaphore(%3 : memref<!tpu.dma_semaphore, #tpu.memory_space<semaphore_mem>>)
    %c0_i32_8 = arith.constant 0 : i32
    %c0_i32_9 = arith.constant 0 : i32
    %c0_i32_10 = arith.constant 0 : i32
    %c0_i32_11 = arith.constant 0 : i32
    %c0_i32_12 = arith.constant 0 : i32
    %4 = tpu.memref_slice %arg0[%c0_i32_9, %c0_i32_10, %c0_i32_11, %c0_i32_12] : memref<2x4x16x16xf32, #tpu.memory_space<any>> -> memref<2x4x16x16xf32, #tpu.memory_space<any>>
    %c0_i32_13 = arith.constant 0 : i32
    %c0_i32_14 = arith.constant 0 : i32
    %c0_i32_15 = arith.constant 0 : i32
    %c0_i32_16 = arith.constant 0 : i32
    %5 = tpu.memref_slice %arg1[%c0_i32_13, %c0_i32_14, %c0_i32_15, %c0_i32_16] : memref<2x4x16x16xf32, #tpu.memory_space<any>> -> memref<2x4x16x16xf32, #tpu.memory_space<any>>
    %6 = tpu.memref_slice %arg2[%c0_i32_8] : memref<1x!tpu.dma_semaphore, #tpu.memory_space<semaphore_mem>> -> memref<1x!tpu.dma_semaphore, #tpu.memory_space<semaphore_mem>>
    %7 = tpu.memref_squeeze %6 : memref<1x!tpu.dma_semaphore, #tpu.memory_space<semaphore_mem>> -> memref<!tpu.dma_semaphore, #tpu.memory_space<semaphore_mem>>
    tpu.wait_dma2 semaphore(%7 : memref<!tpu.dma_semaphore, #tpu.memory_space<semaphore_mem>>) src(%4 : memref<2x4x16x16xf32, #tpu.memory_space<any>>) dst(%5 : memref<2x4x16x16xf32, #tpu.memory_space<any>>)
    return
  }
}

</mosaic_0001>

<llo_original>
// kernel: tpu_custom_call.1
$region0: #{tpu_custom_call.1}
  #allocation0 [shape = 'u32[]', space=smem, size = 0x4, offset = 0x4, fixed_abs, tag = 'smem constant byte address 0x4 - core index']
  #allocation1 [shape = 'u32[72,128]{1,0:T(1,128)}', space=vmem, size = 0x9000, scoped, tag = 'internal scratch']
  #allocation2 [shape = 's32[1]{0}', space=sflag, size = 0x4, scoped, tag = 'scratch operand']
  #allocation3 [shape = 's32[]', space=sflag, size = 0x4, offset = 0, fixed_abs, tag = 'sflag constant byte address 0x0 - dummy sync flag']
  #allocation4 [shape = 'u32[0]{0}', space=smem, size = 0, offset = 0, fixed_abs, tag = 'smem constant byte address 0x0 - null']
  %s0 = inlined_call_operand.hbm [shape: f32[2,4,16,16], index: 0, kind: input, shape index: {}]
  %s1 = inlined_call_operand.hbm [shape: f32[2,4,16,16], index: 1, kind: output, shape index: {}]
  %s2 = sld [smem:[#allocation0]]
  $region2: #{tpu_custom_call.1} parent=0
    _
  %s4 = ssub.s32 1, %s2
  %s5 = scalar_select 0, %s4, %s2
  %s7 = sshll.u32 1, 14
  %s8 = sxor.u32 4294967295, %s7
  %s10 = sshll.u32 %s0, 4
  %s11 = int_to_ptr.hbm [resolvable:$true] %s10
  %s12 = sshll.u32 %s1, 4
  %s13 = int_to_ptr.hbm [resolvable:$true] %s12
  %16 = dma.general %s11, 2048, %s13, [#allocation2], [#allocation3], [#allocation4], 0, 0
  %s17 = smul.u32 2, 4
  %s18 = smul.u32 %s17, 16
  %s19 = smul.u32 %s18, 1
  %s20 = sshll.u32 %s19, 4
  %21 = dma.done [#allocation2], %s20
  %22 = vsyncmov [#allocation2]
  %s23 = vpop.sfrf %22
  %p24 = scmp.eq.s32.totalorder %s23, 0
  %p25 = pneg %p24
  %27 = shalt.err (%p25)

</llo_original>
